<compile_context>
chip_gen: v5e
topology: v5e:2x2
jax: 0.10.0
libtpu: 0.0.40
codegen_flags: <defaults>
</compile_context>

<pallas_src>
import jax
import jax.numpy as jnp
from jax import lax
from jax.experimental import pallas as pl
from jax.experimental.pallas import tpu as pltpu

EPS = 1e-5  # nn.InstanceNorm3d default eps


def _round_up(x, m):
    return (x + m - 1) // m * m


def fade_kernel(mean_ref, rstd_ref, x_ref, col_ref, w_ref, b_ref, out_ref):
    # mean_ref, rstd_ref: (1, Cp, 1)   f32   per-(sample, channel) InstanceNorm stats
    # x_ref:              (1, Cp, TS)  f32   spatial tile of the input
    # col_ref:            (1, Kp, TS)  bf16  im2col tile of feat (K = ks^3 * label_nc, padded)
    # w_ref:              (2*Cp, Kp)   bf16  stacked [gamma; beta] conv weights
    # b_ref:              (2*Cp, 1)    f32   stacked [gamma_bias + 1; beta_bias]
    # out_ref:            (1, Cp, TS)  f32
    cp = out_ref.shape[1]

    # InstanceNorm apply (stats precomputed in the wrapper; eps already folded into rstd).
    normalized = (x_ref[0] - mean_ref[0]) * rstd_ref[0]               # (Cp, TS) f32

    # Both 3D convs as ONE stacked MXU matmul on the im2col columns.
    gb = jnp.dot(w_ref[...], col_ref[0],
                 preferred_element_type=jnp.float32) + b_ref[...]     # (2Cp, TS) f32
    gamma_p1 = gb[:cp]        # this is (1 + gamma): the "+1" was folded into the bias
    beta = gb[cp:]

    out_ref[0] = normalized * gamma_p1 + beta


def _im2col_3d(feat, ks, pad, out_dhw):
    """feat: (N, C_in, Df, Hf, Wf) -> (N, ks^3*C_in, D*H*W); kernel-offset major, channel minor."""
    D, H, W = out_dhw
    fp = jnp.pad(feat, ((0, 0), (0, 0), (pad, pad), (pad, pad), (pad, pad)))
    cols = []
    for kd in range(ks):
        for kh in range(ks):
            for kw in range(ks):
                cols.append(fp[:, :, kd:kd + D, kh:kh + H, kw:kw + W])
    col = jnp.stack(cols, axis=1)                                     # (N, ks^3, C_in, D, H, W)
    N, T, C_in = col.shape[0], col.shape[1], col.shape[2]
    return col.reshape(N, T * C_in, D * H * W)


def _choose_tile_s(S, Cp, Kp, col_itemsize, budget_bytes=36 * 1024 * 1024, max_ts=2048):
    """Largest lane-aligned spatial tile whose double-buffered working set fits the budget."""
    # per-lane bytes: double-buffered x (f32) + col + out (f32), plus one (2Cp, TS) f32 result.
    per_lane = 2 * (4 * Cp + col_itemsize * Kp + 4 * Cp) + 4 * 2 * Cp
    ts = (budget_bytes // max(per_lane, 1)) // 128 * 128
    return int(max(128, min(ts, max_ts, _round_up(S, 128))))


def fade_forward(x, feat, gamma_w, gamma_b, beta_w, beta_b,
                 ks=3, pad=2, conv_dtype=jnp.bfloat16, tile_s=None):
    """x: (N, norm_nc, D, H, W), feat: (N, label_nc, D-2, H-2, W-2). Returns x-shaped output."""
    N, C, D, H, W = x.shape
    label_nc = feat.shape[1]
    # padding = ks//2 + 1 grows the conv output by 2, so feat spatial must be x spatial - 2.
    assert feat.shape == (N, label_nc, D - 2, H - 2, W - 2), (
        f"feat spatial dims must equal x spatial dims - 2; got {feat.shape} vs x {x.shape}")

    S = D * H * W
    x2 = x.astype(jnp.float32).reshape(N, C, S)

    # --- InstanceNorm3d stats: per-(N, C), biased variance, two-pass (numerically stable) ---
    mean = jnp.mean(x2, axis=-1, keepdims=True)                       # (N, C, 1)
    var = jnp.mean((x2 - mean) ** 2, axis=-1, keepdims=True)
    rstd = lax.rsqrt(var + EPS)

    # --- im2col of feat, directly in the (bf16) matmul dtype ---
    col = _im2col_3d(feat.astype(conv_dtype), ks, pad, (D, H, W))     # (N, K, S)
    K = col.shape[1]

    # --- layout padding: channels -> multiple of 8 sublanes; K -> multiple of 8 ---
    Cp = _round_up(C, 8)
    Kp = _round_up(K, 8)
    x2 = jnp.pad(x2, ((0, 0), (0, Cp - C), (0, 0)))
    mean = jnp.pad(mean, ((0, 0), (0, Cp - C), (0, 0)))
    rstd = jnp.pad(rstd, ((0, 0), (0, Cp - C), (0, 0)), constant_values=1.0)
    col = jnp.pad(col, ((0, 0), (0, Kp - K), (0, 0)))

    # --- stacked conv weights/biases: rows [0:C) = gamma, [Cp:Cp+C) = beta; "+1" folded in ---
    gw = gamma_w.transpose(0, 2, 3, 4, 1).reshape(C, K).astype(jnp.float32)
    bw = beta_w.transpose(0, 2, 3, 4, 1).reshape(C, K).astype(jnp.float32)
    w_stack = jnp.zeros((2 * Cp, Kp), jnp.float32)
    w_stack = w_stack.at[:C, :K].set(gw).at[Cp:Cp + C, :K].set(bw).astype(conv_dtype)
    b_stack = jnp.zeros((2 * Cp, 1), jnp.float32)
    b_stack = b_stack.at[:C, 0].set(gamma_b.astype(jnp.float32) + 1.0)
    b_stack = b_stack.at[Cp:Cp + C, 0].set(beta_b.astype(jnp.float32))

    # --- spatial tiling ---
    col_itemsize = jnp.dtype(conv_dtype).itemsize
    TS = tile_s if tile_s is not None else _choose_tile_s(S, Cp, Kp, col_itemsize)
    TS = int(min(_round_up(TS, 128), _round_up(S, 128)))
    S_pad = _round_up(S, TS)
    x2 = jnp.pad(x2, ((0, 0), (0, 0), (0, S_pad - S)))
    col = jnp.pad(col, ((0, 0), (0, 0), (0, S_pad - S)))

    grid = (N, S_pad // TS)

    out = pl.pallas_call(
        fade_kernel,
        out_shape=jax.ShapeDtypeStruct((N, Cp, S_pad), jnp.float32),
        grid=grid,
        in_specs=[
            pl.BlockSpec((1, Cp, 1), lambda n, s: (n, 0, 0)),        # mean
            pl.BlockSpec((1, Cp, 1), lambda n, s: (n, 0, 0)),        # rstd
            pl.BlockSpec((1, Cp, TS), lambda n, s: (n, 0, s)),       # x spatial tile
            pl.BlockSpec((1, Kp, TS), lambda n, s: (n, 0, s)),       # im2col spatial tile
            pl.BlockSpec((2 * Cp, Kp), lambda n, s: (0, 0)),         # stacked conv weights
            pl.BlockSpec((2 * Cp, 1), lambda n, s: (0, 0)),          # stacked conv biases
        ],
        out_specs=pl.BlockSpec((1, Cp, TS), lambda n, s: (n, 0, s)),
        compiler_params=pltpu.CompilerParams(
            dimension_semantics=("parallel", "parallel"),
            vmem_limit_bytes=48 * 1024 * 1024,
        ),
    )(mean, rstd, x2, col, w_stack, b_stack)

    return out[:, :C, :S].reshape(N, C, D, H, W)


def fade_reference(x, feat, gamma_w, gamma_b, beta_w, beta_b, conv_dtype=None):
    """Pure-JAX reference matching the PyTorch module (f32). If conv_dtype is given, the
    conv operands are rounded to that dtype first (to mirror the kernel's quantization)."""
    x = x.astype(jnp.float32)
    feat = feat.astype(jnp.float32)
    gamma_w = gamma_w.astype(jnp.float32)
    beta_w = beta_w.astype(jnp.float32)
    if conv_dtype is not None:
        feat = feat.astype(conv_dtype).astype(jnp.float32)
        gamma_w = gamma_w.astype(conv_dtype).astype(jnp.float32)
        beta_w = beta_w.astype(conv_dtype).astype(jnp.float32)
    mean = x.mean(axis=(2, 3, 4), keepdims=True)
    var = ((x - mean) ** 2).mean(axis=(2, 3, 4), keepdims=True)
    normalized = (x - mean) / jnp.sqrt(var + EPS)
    dn = lax.conv_dimension_numbers(feat.shape, gamma_w.shape, ('NCDHW', 'OIDHW', 'NCDHW'))
    pad3 = [(2, 2)] * 3
    gamma = lax.conv_general_dilated(feat, gamma_w, (1, 1, 1), pad3, dimension_numbers=dn,
                                     precision=lax.Precision.HIGHEST) \
        + gamma_b.reshape(1, -1, 1, 1, 1)
    beta = lax.conv_general_dilated(feat, beta_w, (1, 1, 1), pad3, dimension_numbers=dn,
                                    precision=lax.Precision.HIGHEST) \
        + beta_b.reshape(1, -1, 1, 1, 1)
    return normalized * (1.0 + gamma) + beta


if __name__ == "__main__":
    key = jax.random.PRNGKey(0)
    norm_nc, label_nc, ks = 4, 3, 3
    N, D, H, W = 2, 16, 16, 16                 # x spatial; S = 4096 -> multiple spatial tiles
    Df, Hf, Wf = D - 2, H - 2, W - 2           # feat spatial (conv pad=2 grows it back by 2)

    k_x, k_f, k_gw, k_gb, k_bw, k_bb = jax.random.split(key, 6)
    x = jax.random.normal(k_x, (N, norm_nc, D, H, W), jnp.float32)
    feat = jax.random.normal(k_f, (N, label_nc, Df, Hf, Wf), jnp.float32)

    # Deterministic synthetic conv parameters (shapes from Conv3d(label_nc, norm_nc, ks)).
    gamma_w = 0.1 * jax.random.normal(k_gw, (norm_nc, label_nc, ks, ks, ks), jnp.float32)
    gamma_b = 0.1 * jax.random.normal(k_gb, (norm_nc,), jnp.float32)
    beta_w = 0.1 * jax.random.normal(k_bw, (norm_nc, label_nc, ks, ks, ks), jnp.float32)
    beta_b = 0.1 * jax.random.normal(k_bb, (norm_nc,), jnp.float32)

    out = jax.block_until_ready(
        fade_forward(x, feat, gamma_w, gamma_b, beta_w, beta_b))
    assert out.shape == (N, norm_nc, D, H, W)

    # Tight check vs. a reference using the same bf16-quantized conv operands as the kernel.
    ref_q = fade_reference(x, feat, gamma_w, gamma_b, beta_w, beta_b, conv_dtype=jnp.bfloat16)
    assert jnp.allclose(out, ref_q, rtol=1e-3, atol=1e-3), "mismatch vs quantized reference"

    # Loose check vs. the full-f32 PyTorch-faithful reference (tolerance = bf16 conv rounding).
    ref = fade_reference(x, feat, gamma_w, gamma_b, beta_w, beta_b)
    assert jnp.allclose(out, ref, rtol=5e-2, atol=5e-2), "mismatch vs f32 reference"

    print("KERNEL_OK")
</pallas_src>

<mosaic_0001>
module attributes {stable_mosaic.version = 11 : i64} {
  func.func @fade_kernel(%arg0: i32, %arg1: i32, %arg2: memref<1x8x1xf32, #tpu.memory_space<vmem>>, %arg3: memref<1x8x1xf32, #tpu.memory_space<vmem>>, %arg4: memref<1x8x2048xf32, #tpu.memory_space<vmem>>, %arg5: memref<1x88x2048xbf16, #tpu.memory_space<vmem>>, %arg6: memref<16x88xbf16, #tpu.memory_space<vmem>>, %arg7: memref<16x1xf32, #tpu.memory_space<vmem>>, %arg8: memref<1x8x2048xf32, #tpu.memory_space<vmem>>) attributes {dimension_semantics = [#tpu.dimension_semantics<parallel>, #tpu.dimension_semantics<parallel>], iteration_bounds = array<i64: 2, 2>, scalar_prefetch = 0 : i64, scratch_operands = 0 : i64, tpu.core_type = #tpu.core_type<tc>, window_params = [{transform_indices = @transform_0, window_bounds = array<i64: 1, 8, 1>}, {transform_indices = @transform_1, window_bounds = array<i64: 1, 8, 1>}, {transform_indices = @transform_2, window_bounds = array<i64: 1, 8, 2048>}, {transform_indices = @transform_3, window_bounds = array<i64: 1, 88, 2048>}, {pipeline_mode = #tpu.pipeline_mode<synchronous>, transform_indices = @transform_4, window_bounds = array<i64: 16, 88>}, {pipeline_mode = #tpu.pipeline_mode<synchronous>, transform_indices = @transform_5, window_bounds = array<i64: 16, 1>}, {transform_indices = @transform_6, window_bounds = array<i64: 1, 8, 2048>}]} {
    %c0 = arith.constant 0 : index
    %c0_0 = arith.constant 0 : index
    %c0_1 = arith.constant 0 : index
    %0 = vector.load %arg4[%c0, %c0_0, %c0_1] : memref<1x8x2048xf32, #tpu.memory_space<vmem>>, vector<1x8x2048xf32>
    %1 = vector.shape_cast %0 : vector<1x8x2048xf32> to vector<8x2048xf32>
    %c0_2 = arith.constant 0 : index
    %c0_3 = arith.constant 0 : index
    %c0_4 = arith.constant 0 : index
    %2 = vector.load %arg2[%c0_2, %c0_3, %c0_4] : memref<1x8x1xf32, #tpu.memory_space<vmem>>, vector<1x8x1xf32>
    %3 = vector.shape_cast %2 : vector<1x8x1xf32> to vector<8x1xf32>
    %4 = vector.broadcast %3 : vector<8x1xf32> to vector<8x2048xf32>
    %5 = arith.subf %1, %4 : vector<8x2048xf32>
    %c0_5 = arith.constant 0 : index
    %c0_6 = arith.constant 0 : index
    %c0_7 = arith.constant 0 : index
    %6 = vector.load %arg3[%c0_5, %c0_6, %c0_7] : memref<1x8x1xf32, #tpu.memory_space<vmem>>, vector<1x8x1xf32>
    %7 = vector.shape_cast %6 : vector<1x8x1xf32> to vector<8x1xf32>
    %8 = vector.broadcast %7 : vector<8x1xf32> to vector<8x2048xf32>
    %9 = arith.mulf %5, %8 : vector<8x2048xf32>
    %c0_8 = arith.constant 0 : index
    %c0_9 = arith.constant 0 : index
    %10 = vector.load %arg6[%c0_8, %c0_9] : memref<16x88xbf16, #tpu.memory_space<vmem>>, vector<16x88xbf16>
    %c0_10 = arith.constant 0 : index
    %c0_11 = arith.constant 0 : index
    %c0_12 = arith.constant 0 : index
    %11 = vector.load %arg5[%c0_10, %c0_11, %c0_12] : memref<1x88x2048xbf16, #tpu.memory_space<vmem>>, vector<1x88x2048xbf16>
    %12 = vector.shape_cast %11 : vector<1x88x2048xbf16> to vector<88x2048xbf16>
    %cst = arith.constant dense<0.000000e+00> : vector<16x2048xf32>
    %13 = tpu.matmul %10, %12, %cst {dimension_numbers = #tpu.dot_dimension_numbers<[1], [0], [0], [1], [0, 0, 1, 1], [], []>} : vector<16x88xbf16>, vector<88x2048xbf16>, vector<16x2048xf32> -> vector<16x2048xf32>
    %c0_13 = arith.constant 0 : index
    %c0_14 = arith.constant 0 : index
    %14 = vector.load %arg7[%c0_13, %c0_14] : memref<16x1xf32, #tpu.memory_space<vmem>>, vector<16x1xf32>
    %15 = vector.broadcast %14 : vector<16x1xf32> to vector<16x2048xf32>
    %16 = arith.addf %13, %15 : vector<16x2048xf32>
    %17 = vector.extract_strided_slice %16 {offsets = [0, 0], sizes = [8, 2048], strides = [1, 1]} : vector<16x2048xf32> to vector<8x2048xf32>
    %18 = vector.extract_strided_slice %16 {offsets = [8, 0], sizes = [8, 2048], strides = [1, 1]} : vector<16x2048xf32> to vector<8x2048xf32>
    %19 = arith.mulf %9, %17 : vector<8x2048xf32>
    %20 = arith.addf %19, %18 : vector<8x2048xf32>
    %c0_15 = arith.constant 0 : index
    %c0_16 = arith.constant 0 : index
    %c0_17 = arith.constant 0 : index
    %21 = vector.load %arg8[%c0_15, %c0_16, %c0_17] : memref<1x8x2048xf32, #tpu.memory_space<vmem>>, vector<1x8x2048xf32>
    %22 = vector.shape_cast %21 : vector<1x8x2048xf32> to vector<8x2048xf32>
    %23 = vector.shape_cast %20 : vector<8x2048xf32> to vector<1x8x2048xf32>
    tpu.vector_store %arg8[%c0_15, %c0_16, %c0_17], %23 {strides = array<i32>} : memref<1x8x2048xf32, #tpu.memory_space<vmem>>, vector<1x8x2048xf32>,
    return
  }
  func.func @transform_0(%arg0: i32, %arg1: i32) -> (i32, i32, i32) {
    %c0_i32 = arith.constant 0 : i32
    %c0_i32_0 = arith.constant 0 : i32
    %c0_i32_1 = arith.constant 0 : i32
    return %arg0, %c0_i32, %c0_i32_0 : i32, i32, i32
  }
  func.func @transform_1(%arg0: i32, %arg1: i32) -> (i32, i32, i32) {
    %c0_i32 = arith.constant 0 : i32
    %c0_i32_0 = arith.constant 0 : i32
    %c0_i32_1 = arith.constant 0 : i32
    return %arg0, %c0_i32, %c0_i32_0 : i32, i32, i32
  }
  func.func @transform_2(%arg0: i32, %arg1: i32) -> (i32, i32, i32) {
    %c0_i32 = arith.constant 0 : i32
    %c0_i32_0 = arith.constant 0 : i32
    return %arg0, %c0_i32, %arg1 : i32, i32, i32
  }
  func.func @transform_3(%arg0: i32, %arg1: i32) -> (i32, i32, i32) {
    %c0_i32 = arith.constant 0 : i32
    %c0_i32_0 = arith.constant 0 : i32
    return %arg0, %c0_i32, %arg1 : i32, i32, i32
  }
  func.func @transform_4(%arg0: i32, %arg1: i32) -> (i32, i32) {
    %c0_i32 = arith.constant 0 : i32
    %c0_i32_0 = arith.constant 0 : i32
    %c0_i32_1 = arith.constant 0 : i32
    return %c0_i32, %c0_i32_0 : i32, i32
  }
  func.func @transform_5(%arg0: i32, %arg1: i32) -> (i32, i32) {
    %c0_i32 = arith.constant 0 : i32
    %c0_i32_0 = arith.constant 0 : i32
    %c0_i32_1 = arith.constant 0 : i32
    return %c0_i32, %c0_i32_0 : i32, i32
  }
  func.func @transform_6(%arg0: i32, %arg1: i32) -> (i32, i32, i32) {
    %c0_i32 = arith.constant 0 : i32
    %c0_i32_0 = arith.constant 0 : i32
    return %arg0, %c0_i32, %arg1 : i32, i32, i32
  }
}

</mosaic_0001>

<llo_original>
// kernel: tpu_custom_call.1
$region0: #{tpu_custom_call.1}
  #allocation0 [shape = 'u32[]', space=smem, size = 0x4, offset = 0x4, fixed_abs, tag = 'smem constant byte address 0x4 - core index']
  #allocation1 [shape = 'u32[72,128]{1,0:T(1,128)}', space=vmem, size = 0x9000, scoped, tag = 'internal scratch']
  %s0 = inlined_call_operand.vmem [shape: f32[2,8,1], index: 0, kind: input, shape index: {}]
  %s1 = inlined_call_operand.vmem [shape: f32[2,8,1], index: 1, kind: input, shape index: {}]
  %s2 = inlined_call_operand.hbm [shape: f32[2,8,4096], index: 2, kind: input, shape index: {}]
  %s3 = inlined_call_operand.hbm [shape: bf16[2,88,4096], index: 3, kind: input, shape index: {}]
  %s4 = inlined_call_operand.hbm [shape: bf16[16,88], index: 4, kind: input, shape index: {}]
  %s5 = inlined_call_operand.vmem [shape: f32[16,1], index: 5, kind: input, shape index: {}]
  %s6 = inlined_call_operand.hbm [shape: f32[2,8,4096], index: 6, kind: output, shape index: {}]
  %s7 = sld [smem:[#allocation0]]
  $region69: #{tpu_custom_call.1} parent=0
    _
  %s9 = ssub.s32 1, %s7
  %s10 = scalar_select 0, %s9, %s7
  $region1: #{tpu_custom_call.1} parent=0
    #allocation2 [shape = 'u8[131072]{0}', space=vmem, size = 0x20000, scoped, tag = 'input window, operand 2']
    #allocation3 [shape = 's32[2]{0}', space=sflag, size = 0x8, scoped, tag = 'scoped memory for tpu_custom_call.1']
    #allocation4 [shape = 's32[2]{0}', space=sflag, size = 0x8, scoped, tag = 'scoped memory for tpu_custom_call.1']
    #allocation5 [shape = 'u8[720896]{0}', space=vmem, size = 0xb0000, scoped, tag = 'input window, operand 3']
    #allocation6 [shape = 's32[2]{0}', space=sflag, size = 0x8, scoped, tag = 'scoped memory for tpu_custom_call.1']
    #allocation7 [shape = 'u8[4096]{0}', space=vmem, size = 0x1000, scoped, tag = 'input window, operand 4, single buffered']
    #allocation8 [shape = 'u8[131072]{0}', space=vmem, size = 0x20000, scoped, tag = 'output window, operand 0']
    %11 = vsyncpa [#allocation3], 0
    %s12 = scalar_lea.sflag [#allocation3], 1
    %13 = vsyncpa %s12, 0
    %14 = vsyncpa [#allocation6], 0
    %s15 = scalar_lea.sflag [#allocation6], 1
    %16 = vsyncpa %s15, 0
    %17 = vsyncpa [#allocation4], 0
    %s18 = scalar_lea.sflag [#allocation4], 1
    %19 = vsyncpa %s18, 0
    loop: start=0, step=1, limit=6
    $region2: #{tpu_custom_call.1} parent=1 // loop_pre_header
      _
    $region3: #{tpu_custom_call.1} parent=1 // loop_header
      %s21 = sphi 0, %s25
      %p22 = scmp.ge.s32.totalorder %s21, 6
      %s28 = sphi 0, %s40
      %s29 = sphi 0, %s36
      %s30 = sphi 0, %s28
      %s31 = sphi 0, %s29
      %s32 = sphi 0, %s30
      %s33 = sphi 0, %s31
      %s43 = sphi 0, %s45
      %s46 = sphi 0, %s43
      %s47 = sphi 0, %s46
      %s63 = sphi 0, %s47
      %s69 = sphi 0, %s71
      %s72 = sphi 0, %s69
      %s73 = sphi 0, %s72
      %s89 = sphi 0, %s73
      %s97 = sphi 0, %s99
      %s100 = sphi 0, %s97
      %s101 = sphi 0, %s100
      %s117 = sphi 0, %s101
      %s125 = sphi 0, %s127
      %s128 = sphi 0, %s125
      %s129 = sphi 0, %s128
      %s145 = sphi 0, %s129
      %s149 = sphi 0, %s149
      %s151 = sphi 0, %s149
      %s152 = sphi 0, %s151
      %s166 = sphi 0, %s152
      %s170 = sphi 0, %s170
      %s172 = sphi 0, %s170
      %s173 = sphi 0, %s172
      %s187 = sphi 0, %s173
      %s195 = sphi 0, %s197
      %s198 = sphi 0, %s195
      %s199 = sphi 0, %s198
      %s215 = sphi 0, %s199
    $region4: #{tpu_custom_call.1} parent=1 // loop_header_branch
      %24 = sbr.rel (%p22) target = $region8
    $region5: #{tpu_custom_call.1} parent=1 // loop_body
      %s26 = ssub.s32 %s21, 1
      %s27 = ssub.s32 %s21, 2
      %s34 = sadd.s32 1, %s29
      %p35 = scmp.ge.s32.totalorder %s34, 2
      %s36 = scalar_select %p35, 0, %s34
      %s37 = sadd.s32 1, %s28
      %s38 = scalar_select %p35, %s37, %s28
      %p39 = scmp.ge.s32.totalorder %s38, 2
      %s40 = scalar_select %p39, 0, %s38
      %s41 = ssub.s32 %s28, %s40
      %p42 = scmp.eq.s32.totalorder %s41, 0
      %s44 = sadd.s32 %s43, 1
      %s45 = scalar_select %p42, %s43, %s44
      %p48 = pneg %p42
      %p49 = scmp.eq.s32.totalorder %s21, 3
      %p50 = por %p48, %p49
      %p51 = scmp.ne.s32.totalorder %s43, %s46
      %p52 = scmp.eq.s32.totalorder %s21, 0
      %p53 = por %p51, %p52
      %p54 = scmp.ne.s32.totalorder %s43, %s46
      %p55 = scmp.eq.s32.totalorder %s26, 3
      %p56 = por %p54, %p55
      %p57 = scmp.ne.s32.totalorder %s46, %s47
      %p58 = scmp.eq.s32.totalorder %s26, 0
      %p59 = por %p57, %p58
      %p60 = scmp.ne.s32.totalorder %s46, %s47
      %p61 = scmp.eq.s32.totalorder %s27, 3
      %p62 = por %p60, %p61
      %p64 = scmp.ne.s32.totalorder %s47, %s63
      %p65 = scmp.eq.s32.totalorder %s27, 0
      %p66 = por %p64, %p65
      %s67 = ssub.s32 %s28, %s40
      %p68 = scmp.eq.s32.totalorder %s67, 0
      %s70 = sadd.s32 %s69, 1
      %s71 = scalar_select %p68, %s69, %s70
      %p74 = pneg %p68
      %p75 = scmp.eq.s32.totalorder %s21, 3
      %p76 = por %p74, %p75
      %p77 = scmp.ne.s32.totalorder %s69, %s72
      %p78 = scmp.eq.s32.totalorder %s21, 0
      %p79 = por %p77, %p78
      %p80 = scmp.ne.s32.totalorder %s69, %s72
      %p81 = scmp.eq.s32.totalorder %s26, 3
      %p82 = por %p80, %p81
      %p83 = scmp.ne.s32.totalorder %s72, %s73
      %p84 = scmp.eq.s32.totalorder %s26, 0
      %p85 = por %p83, %p84
      %p86 = scmp.ne.s32.totalorder %s72, %s73
      %p87 = scmp.eq.s32.totalorder %s27, 3
      %p88 = por %p86, %p87
      %p90 = scmp.ne.s32.totalorder %s73, %s89
      %p91 = scmp.eq.s32.totalorder %s27, 0
      %p92 = por %p90, %p91
      %s93 = ssub.s32 %s28, %s40
      %s94 = ssub.s32 %s29, %s36
      %s95 = sor.u32 %s93, %s94
      %p96 = scmp.eq.s32.totalorder %s95, 0
      %s98 = sadd.s32 %s97, 1
      %s99 = scalar_select %p96, %s97, %s98
      %p102 = pneg %p96
      %p103 = scmp.eq.s32.totalorder %s21, 3
      %p104 = por %p102, %p103
      %p105 = scmp.ne.s32.totalorder %s97, %s100
      %p106 = scmp.eq.s32.totalorder %s21, 0
      %p107 = por %p105, %p106
      %p108 = scmp.ne.s32.totalorder %s97, %s100
      %p109 = scmp.eq.s32.totalorder %s26, 3
      %p110 = por %p108, %p109
      %p111 = scmp.ne.s32.totalorder %s100, %s101
      %p112 = scmp.eq.s32.totalorder %s26, 0
      %p113 = por %p111, %p112
      %p114 = scmp.ne.s32.totalorder %s100, %s101
      %p115 = scmp.eq.s32.totalorder %s27, 3
      %p116 = por %p114, %p115
      %p118 = scmp.ne.s32.totalorder %s101, %s117
      %p119 = scmp.eq.s32.totalorder %s27, 0
      %p120 = por %p118, %p119
      %s121 = ssub.s32 %s28, %s40
      %s122 = ssub.s32 %s29, %s36
      %s123 = sor.u32 %s121, %s122
      %p124 = scmp.eq.s32.totalorder %s123, 0
      %s126 = sadd.s32 %s125, 1
      %s127 = scalar_select %p124, %s125, %s126
      %p130 = pneg %p124
      %p131 = scmp.eq.s32.totalorder %s21, 3
      %p132 = por %p130, %p131
      %p133 = scmp.ne.s32.totalorder %s125, %s128
      %p134 = scmp.eq.s32.totalorder %s21, 0
      %p135 = por %p133, %p134
      %p136 = scmp.ne.s32.totalorder %s125, %s128
      %p137 = scmp.eq.s32.totalorder %s26, 3
      %p138 = por %p136, %p137
      %p139 = scmp.ne.s32.totalorder %s128, %s129
      %p140 = scmp.eq.s32.totalorder %s26, 0
      %p141 = por %p139, %p140
      %p142 = scmp.ne.s32.totalorder %s128, %s129
      %p143 = scmp.eq.s32.totalorder %s27, 3
      %p144 = por %p142, %p143
      %p146 = scmp.ne.s32.totalorder %s129, %s145
      %p147 = scmp.eq.s32.totalorder %s27, 0
      %p148 = por %p146, %p147
      %s150 = sadd.s32 %s149, 1
      %p153 = scmp.eq.s32.totalorder %s21, 3
      %p154 = scmp.ne.s32.totalorder %s149, %s151
      %p155 = scmp.eq.s32.totalorder %s21, 0
      %p156 = por %p154, %p155
      %p157 = scmp.ne.s32.totalorder %s149, %s151
      %p158 = scmp.eq.s32.totalorder %s26, 3
      %p159 = por %p157, %p158
      %p160 = scmp.ne.s32.totalorder %s151, %s152
      %p161 = scmp.eq.s32.totalorder %s26, 0
      %p162 = por %p160, %p161
      %p163 = scmp.ne.s32.totalorder %s151, %s152
      %p164 = scmp.eq.s32.totalorder %s27, 3
      %p165 = por %p163, %p164
      %p167 = scmp.ne.s32.totalorder %s152, %s166
      %p168 = scmp.eq.s32.totalorder %s27, 0
      %p169 = por %p167, %p168
      %s171 = sadd.s32 %s170, 1
      %p174 = scmp.eq.s32.totalorder %s21, 3
      %p175 = scmp.ne.s32.totalorder %s170, %s172
      %p176 = scmp.eq.s32.totalorder %s21, 0
      %p177 = por %p175, %p176
      %p178 = scmp.ne.s32.totalorder %s170, %s172
      %p179 = scmp.eq.s32.totalorder %s26, 3
      %p180 = por %p178, %p179
      %p181 = scmp.ne.s32.totalorder %s172, %s173
      %p182 = scmp.eq.s32.totalorder %s26, 0
      %p183 = por %p181, %p182
      %p184 = scmp.ne.s32.totalorder %s172, %s173
      %p185 = scmp.eq.s32.totalorder %s27, 3
      %p186 = por %p184, %p185
      %p188 = scmp.ne.s32.totalorder %s173, %s187
      %p189 = scmp.eq.s32.totalorder %s27, 0
      %p190 = por %p188, %p189
      %s191 = ssub.s32 %s28, %s40
      %s192 = ssub.s32 %s29, %s36
      %s193 = sor.u32 %s191, %s192
      %p194 = scmp.eq.s32.totalorder %s193, 0
      %s196 = sadd.s32 %s195, 1
      %s197 = scalar_select %p194, %s195, %s196
      %p200 = pneg %p194
      %p201 = scmp.eq.s32.totalorder %s21, 3
      %p202 = por %p200, %p201
      %p203 = scmp.ne.s32.totalorder %s195, %s198
      %p204 = scmp.eq.s32.totalorder %s21, 0
      %p205 = por %p203, %p204
      %p206 = scmp.ne.s32.totalorder %s195, %s198
      %p207 = scmp.eq.s32.totalorder %s26, 3
      %p208 = por %p206, %p207
      %p209 = scmp.ne.s32.totalorder %s198, %s199
      %p210 = scmp.eq.s32.totalorder %s26, 0
      %p211 = por %p209, %p210
      %p212 = scmp.ne.s32.totalorder %s198, %s199
      %p213 = scmp.eq.s32.totalorder %s27, 3
      %p214 = por %p212, %p213
      %p216 = scmp.ne.s32.totalorder %s199, %s215
      %p217 = scmp.eq.s32.totalorder %s27, 0
      %p218 = por %p216, %p217
      %p219 = scmp.le.s32.totalorder 1, %s21
      %p220 = scmp.lt.s32.totalorder %s21, 5
      %p221 = pnand %p219, %p220
      %p222 = pneg %p221
      // Predicated region
      $region9: #{tpu_custom_call.1} parent=5 // pred_check
        _
      $region10: #{tpu_custom_call.1} parent=5 // pred_check_branch
        %224 = sbr.rel (%p221) target = $region12
      $region11: #{tpu_custom_call.1} parent=5 // pred_region
        %s225 = ssub.s32 %s21, 1
        // Predicated region
        $region13: #{tpu_custom_call.1} parent=11 // pred_check
          %p226 = pneg %p162
        $region14: #{tpu_custom_call.1} parent=11 // pred_check_branch
          %228 = sbr.rel (%p226) target = $region16
        $region15: #{tpu_custom_call.1} parent=11 // pred_region
          %230 = vsyncadd [#allocation6], 0
          %s231 = sshll.u32 %s4, 4
          %s232 = int_to_ptr.hbm [resolvable:$true] %s231
          %s233 = sshll.u32 [#allocation7], 4
          %s234 = int_to_ptr.vmem [resolvable:$true] %s233
          %239 = dma.hbm_to_vmem [thread:$0]  %s232, 128, %s234, [#allocation6], 64, 64, 4
        $region16: #{tpu_custom_call.1} parent=11 // pred_fallthru
          _
        // Predicated region
        $region17: #{tpu_custom_call.1} parent=11 // pred_check
          %p240 = pneg %p183
        $region18: #{tpu_custom_call.1} parent=11 // pred_check_branch
          %242 = sbr.rel (%p240) target = $region20
        $region19: #{tpu_custom_call.1} parent=11 // pred_region
          _
        $region20: #{tpu_custom_call.1} parent=11 // pred_fallthru
          _
      $region12: #{tpu_custom_call.1} parent=5 // pred_fallthru
        _
      %p243 = scmp.lt.s32.totalorder %s21, 4
      // Predicated region
      $region21: #{tpu_custom_call.1} parent=5 // pred_check
        %p244 = pneg %p243
      $region22: #{tpu_custom_call.1} parent=5 // pred_check_branch
        %246 = sbr.rel (%p244) target = $region24
      $region23: #{tpu_custom_call.1} parent=5 // pred_region
        // Predicated region
        $region25: #{tpu_custom_call.1} parent=23 // pred_check
          %p247 = pneg %p53
        $region26: #{tpu_custom_call.1} parent=23 // pred_check_branch
          %249 = sbr.rel (%p247) target = $region28
        $region27: #{tpu_custom_call.1} parent=23 // pred_region
          %p250 = scmp.lt.s32.totalorder %s28, 1
          %s251 = scalar_select %p250, %s28, 1
          %s252 = smul.addr %s251, 8
          %s253 = scalar_lea.vmem %s0, %s252
        $region28: #{tpu_custom_call.1} parent=23 // pred_fallthru
          _
        // Predicated region
        $region29: #{tpu_custom_call.1} parent=23 // pred_check
          %p254 = pneg %p79
        $region30: #{tpu_custom_call.1} parent=23 // pred_check_branch
          %256 = sbr.rel (%p254) target = $region32
        $region31: #{tpu_custom_call.1} parent=23 // pred_region
          %p257 = scmp.lt.s32.totalorder %s28, 1
          %s258 = scalar_select %p257, %s28, 1
          %s259 = smul.addr %s258, 8
          %s260 = scalar_lea.vmem %s1, %s259
        $region32: #{tpu_custom_call.1} parent=23 // pred_fallthru
          _
        // Predicated region
        $region33: #{tpu_custom_call.1} parent=23 // pred_check
          %p261 = pneg %p107
        $region34: #{tpu_custom_call.1} parent=23 // pred_check_branch
          %263 = sbr.rel (%p261) target = $region36
        $region35: #{tpu_custom_call.1} parent=23 // pred_region
          %s264 = sand.u32 %s97, 1
          %s265 = scalar_lea.sflag [#allocation3], %s264
          %s266 = sand.u32 %s97, 1
          %s267 = smul.addr %s266, 128
          %s268 = scalar_lea.vmem [#allocation2], %s267
          %s269 = smul.u32 16, %s29
          %271 = vsyncadd %s265, 0
          %s272 = smul.addr %s28, 32
          %s273 = sadd.s32 %s269, %s272
          %s274 = smul.addr %s273, 8
          %s275 = scalar_lea.hbm %s2, %s274
          %s277 = sshll.u32 %s275, 4
          %s278 = int_to_ptr.hbm [resolvable:$true] %s277
          %s279 = sshll.u32 %s268, 4
          %s280 = int_to_ptr.vmem [resolvable:$true] %s279
          %282 = dma.hbm_to_vmem [thread:$0]  %s278, 2048, %s280, %s265
        $region36: #{tpu_custom_call.1} parent=23 // pred_fallthru
          _
        // Predicated region
        $region37: #{tpu_custom_call.1} parent=23 // pred_check
          %p283 = pneg %p135
        $region38: #{tpu_custom_call.1} parent=23 // pred_check_branch
          %285 = sbr.rel (%p283) target = $region40
        $region39: #{tpu_custom_call.1} parent=23 // pred_region
          %s286 = sand.u32 %s21, 1
          %s287 = scalar_lea.sflag [#allocation6], %s286
          %s288 = sand.u32 %s125, 1
          %s289 = smul.addr %s288, 704
          %s290 = scalar_lea.vmem [#allocation5], %s289
          %s291 = smul.u32 16, %s29
          %293 = vsyncadd %s287, 0
          %s294 = smul.addr %s28, 352
          %s295 = sadd.s32 %s291, %s294
          %s296 = smul.addr %s295, 4
          %s297 = scalar_lea.hbm %s3, %s296
          %s298 = sshll.u32 %s297, 4
          %s299 = int_to_ptr.hbm [resolvable:$true] %s298
          %s300 = sshll.u32 %s290, 4
          %s301 = int_to_ptr.vmem [resolvable:$true] %s300
          %306 = dma.hbm_to_vmem [thread:$0]  %s299, 11264, %s301, %s287, 2048, 1024, 64
        $region40: #{tpu_custom_call.1} parent=23 // pred_fallthru
          _
      $region24: #{tpu_custom_call.1} parent=5 // pred_fallthru
        _
      %p307 = scmp.le.s32.totalorder 1, %s21
      %p308 = scmp.lt.s32.totalorder %s21, 5
      %p309 = pnand %p307, %p308
      %p310 = pneg %p309
      // Predicated region
      $region41: #{tpu_custom_call.1} parent=5 // pred_check
        _
      $region42: #{tpu_custom_call.1} parent=5 // pred_check_branch
        %312 = sbr.rel (%p309) target = $region44
      $region43: #{tpu_custom_call.1} parent=5 // pred_region
        %s313 = ssub.s32 %s21, 1
        %s314 = sand.u32 %s100, 1
        %s315 = scalar_lea.sflag [#allocation3], %s314
        %s316 = sand.u32 %s100, 1
        %s317 = smul.addr %s316, 128
        %s318 = scalar_lea.vmem [#allocation2], %s317
        // Predicated region
        $region45: #{tpu_custom_call.1} parent=43 // pred_check
          %p319 = pneg %p113
        $region46: #{tpu_custom_call.1} parent=43 // pred_check_branch
          %321 = sbr.rel (%p319) target = $region48
        $region47: #{tpu_custom_call.1} parent=43 // pred_region
          %323 = dma.done %s315, 2048
        $region48: #{tpu_custom_call.1} parent=43 // pred_fallthru
          _
        %s324 = sand.u32 %s26, 1
        %s325 = scalar_lea.sflag [#allocation6], %s324
        %s326 = sand.u32 %s128, 1
        %s327 = smul.addr %s326, 704
        %s328 = scalar_lea.vmem [#allocation5], %s327
        // Predicated region
        $region49: #{tpu_custom_call.1} parent=43 // pred_check
          %p329 = pneg %p141
        $region50: #{tpu_custom_call.1} parent=43 // pred_check_branch
          %331 = sbr.rel (%p329) target = $region52
        $region51: #{tpu_custom_call.1} parent=43 // pred_region
          %333 = dma.done %s325, 11264
        $region52: #{tpu_custom_call.1} parent=43 // pred_fallthru
          _
        // Predicated region
        $region53: #{tpu_custom_call.1} parent=43 // pred_check
          %p334 = pneg %p162
        $region54: #{tpu_custom_call.1} parent=43 // pred_check_branch
          %336 = sbr.rel (%p334) target = $region56
        $region55: #{tpu_custom_call.1} parent=43 // pred_region
          %338 = dma.done [#allocation6], 128
        $region56: #{tpu_custom_call.1} parent=43 // pred_fallthru
          _
        %p339 = scmp.lt.s32.totalorder %s30, 1
        %s340 = scalar_select %p339, %s30, 1
        %s341 = smul.addr %s340, 8
        %s342 = scalar_lea.vmem %s0, %s341
        %p343 = pneg %p59
        %p344 = pneg %p56
        %p345 = scmp.lt.s32.totalorder %s30, 1
        %s346 = scalar_select %p345, %s30, 1
        %s347 = smul.addr %s346, 8
        %s348 = scalar_lea.vmem %s1, %s347
        %p349 = pneg %p85
        %p350 = pneg %p82
        %s351 = sand.u32 %s100, 1
        %s352 = scalar_lea.sflag [#allocation3], %s351
        %s353 = sand.u32 %s100, 1
        %s354 = smul.addr %s353, 128
        %s355 = scalar_lea.vmem [#allocation2], %s354
        %p356 = pneg %p113
        %p357 = pneg %p110
        %s358 = sand.u32 %s26, 1
        %s359 = scalar_lea.sflag [#allocation6], %s358
        %s360 = sand.u32 %s128, 1
        %s361 = smul.addr %s360, 704
        %s362 = scalar_lea.vmem [#allocation5], %s361
        %p363 = pneg %p141
        %p364 = pneg %p138
        %p365 = pneg %p162
        %p366 = pneg %p159
        %p367 = pneg %p183
        %p368 = pneg %p180
        %p369 = pneg %p211
        %p370 = pneg %p208
        %s371 = sand.u32 %s198, 1
        %s372 = scalar_lea.sflag [#allocation4], %s371
        %s373 = sand.u32 %s198, 1
        %s374 = smul.addr %s373, 128
        %s375 = scalar_lea.vmem [#allocation8], %s374
        %p376 = scmp.lt.s32.totalorder %s30, 1
        %s377 = scalar_select %p376, %s30, 1
        %s378 = smul.addr %s377, 8
        %s379 = scalar_lea.vmem %s0, %s378
        %p380 = scmp.lt.s32.totalorder %s30, 1
        %s381 = scalar_select %p380, %s30, 1
        %s382 = smul.addr %s381, 8
        %s383 = scalar_lea.vmem %s1, %s382
        %s384 = smul.u32 16, %s31
        %s385 = smul.u32 16, %s31
        %s386 = smul.u32 16, %s31
        %v388 = vld [vmem:[%s318] sm:$0xff]
        %v389 = vld [vmem:[%s318 + $0x8] sm:$0xff]
        %v390 = vld [vmem:[%s318 + $0x10] sm:$0xff]
        %v391 = vld [vmem:[%s318 + $0x18] sm:$0xff]
        %v392 = vld [vmem:[%s318 + $0x20] sm:$0xff]
        %v393 = vld [vmem:[%s318 + $0x28] sm:$0xff]
        %v394 = vld [vmem:[%s318 + $0x30] sm:$0xff]
        %v395 = vld [vmem:[%s318 + $0x38] sm:$0xff]
        %v396 = vld [vmem:[%s318 + $0x40] sm:$0xff]
        %v397 = vld [vmem:[%s318 + $0x48] sm:$0xff]
        %v398 = vld [vmem:[%s318 + $0x50] sm:$0xff]
        %v399 = vld [vmem:[%s318 + $0x58] sm:$0xff]
        %v400 = vld [vmem:[%s318 + $0x60] sm:$0xff]
        %v401 = vld [vmem:[%s318 + $0x68] sm:$0xff]
        %v402 = vld [vmem:[%s318 + $0x70] sm:$0xff]
        %v403 = vld [vmem:[%s318 + $0x78] sm:$0xff]
        %v404 = vld [vmem:[%s379] sm:$0xff]
        %406 = vset.pattern.permute.xlu0 0
        %407 = vperm.xlu0 %406, %v404
        %v408 = vpop.permute.xlu0 %407
        %v410 = vsub.f32 %v388, %v408
        %v411 = vsub.f32 %v389, %v408
        %v412 = vsub.f32 %v390, %v408
        %v413 = vsub.f32 %v391, %v408
        %v414 = vsub.f32 %v392, %v408
        %v415 = vsub.f32 %v393, %v408
        %v416 = vsub.f32 %v394, %v408
        %v417 = vsub.f32 %v395, %v408
        %v418 = vsub.f32 %v396, %v408
        %v419 = vsub.f32 %v397, %v408
        %v420 = vsub.f32 %v398, %v408
        %v421 = vsub.f32 %v399, %v408
        %v422 = vsub.f32 %v400, %v408
        %v423 = vsub.f32 %v401, %v408
        %v424 = vsub.f32 %v402, %v408
        %v425 = vsub.f32 %v403, %v408
        %v426 = vld [vmem:[%s383] sm:$0xff]
        %428 = vset.pattern.permute.xlu0 0
        %429 = vperm.xlu0 %428, %v426
        %v430 = vpop.permute.xlu0 %429
        %v432 = vmul.f32 %v410, %v430
        %v433 = vmul.f32 %v411, %v430
        %v434 = vmul.f32 %v412, %v430
        %v435 = vmul.f32 %v413, %v430
        %v436 = vmul.f32 %v414, %v430
        %v437 = vmul.f32 %v415, %v430
        %v438 = vmul.f32 %v416, %v430
        %v439 = vmul.f32 %v417, %v430
        %v440 = vmul.f32 %v418, %v430
        %v441 = vmul.f32 %v419, %v430
        %v442 = vmul.f32 %v420, %v430
        %v443 = vmul.f32 %v421, %v430
        %v444 = vmul.f32 %v422, %v430
        %v445 = vmul.f32 %v423, %v430
        %v446 = vmul.f32 %v424, %v430
        %v447 = vmul.f32 %v425, %v430
        %v448 = vld [vmem:[#allocation7] sm:$0xf]
        %v449 = vld [vmem:[#allocation7 + $0x4] sm:$0xf]
        %v450 = vld [vmem:[%s328] sm:$0xff]
        %v451 = vld [vmem:[%s328 + $0x8] sm:$0xff]
        %v452 = vld [vmem:[%s328 + $0x10] sm:$0xff]
        %v453 = vld [vmem:[%s328 + $0x18] sm:$0xff]
        %v454 = vld [vmem:[%s328 + $0x20] sm:$0xff]
        %v455 = vld [vmem:[%s328 + $0x28] sm:$0xff]
        %v456 = vld [vmem:[%s328 + $0x30] sm:$0xff]
        %v457 = vld [vmem:[%s328 + $0x38] sm:$0xff]
        %v458 = vld [vmem:[%s328 + $0x40] sm:$0xff]
        %v459 = vld [vmem:[%s328 + $0x48] sm:$0xff]
        %v460 = vld [vmem:[%s328 + $0x50] sm:$0xff]
        %v461 = vld [vmem:[%s328 + $0x58] sm:$0xff]
        %v462 = vld [vmem:[%s328 + $0x60] sm:$0xff]
        %v463 = vld [vmem:[%s328 + $0x68] sm:$0xff]
        %v464 = vld [vmem:[%s328 + $0x70] sm:$0xff]
        %v465 = vld [vmem:[%s328 + $0x78] sm:$0xff]
        %v466 = vld [vmem:[%s328 + $0x80] sm:$0xff]
        %v467 = vld [vmem:[%s328 + $0x88] sm:$0xff]
        %v468 = vld [vmem:[%s328 + $0x90] sm:$0xff]
        %v469 = vld [vmem:[%s328 + $0x98] sm:$0xff]
        %v470 = vld [vmem:[%s328 + $0xa0] sm:$0xff]
        %v471 = vld [vmem:[%s328 + $0xa8] sm:$0xff]
        %v472 = vld [vmem:[%s328 + $0xb0] sm:$0xff]
        %v473 = vld [vmem:[%s328 + $0xb8] sm:$0xff]
        %v474 = vld [vmem:[%s328 + $0xc0] sm:$0xff]
        %v475 = vld [vmem:[%s328 + $0xc8] sm:$0xff]
        %v476 = vld [vmem:[%s328 + $0xd0] sm:$0xff]
        %v477 = vld [vmem:[%s328 + $0xd8] sm:$0xff]
        %v478 = vld [vmem:[%s328 + $0xe0] sm:$0xff]
        %v479 = vld [vmem:[%s328 + $0xe8] sm:$0xff]
        %v480 = vld [vmem:[%s328 + $0xf0] sm:$0xff]
        %v481 = vld [vmem:[%s328 + $0xf8] sm:$0xff]
        %v482 = vld [vmem:[%s328 + $0x100] sm:$0xff]
        %v483 = vld [vmem:[%s328 + $0x108] sm:$0xff]
        %v484 = vld [vmem:[%s328 + $0x110] sm:$0xff]
        %v485 = vld [vmem:[%s328 + $0x118] sm:$0xff]
        %v486 = vld [vmem:[%s328 + $0x120] sm:$0xff]
        %v487 = vld [vmem:[%s328 + $0x128] sm:$0xff]
        %v488 = vld [vmem:[%s328 + $0x130] sm:$0xff]
        %v489 = vld [vmem:[%s328 + $0x138] sm:$0xff]
        %v490 = vld [vmem:[%s328 + $0x140] sm:$0xff]
        %v491 = vld [vmem:[%s328 + $0x148] sm:$0xff]
        %v492 = vld [vmem:[%s328 + $0x150] sm:$0xff]
        %v493 = vld [vmem:[%s328 + $0x158] sm:$0xff]
        %v494 = vld [vmem:[%s328 + $0x160] sm:$0xff]
        %v495 = vld [vmem:[%s328 + $0x168] sm:$0xff]
        %v496 = vld [vmem:[%s328 + $0x170] sm:$0xff]
        %v497 = vld [vmem:[%s328 + $0x178] sm:$0xff]
        %v498 = vld [vmem:[%s328 + $0x180] sm:$0xff]
        %v499 = vld [vmem:[%s328 + $0x188] sm:$0xff]
        %v500 = vld [vmem:[%s328 + $0x190] sm:$0xff]
        %v501 = vld [vmem:[%s328 + $0x198] sm:$0xff]
        %v502 = vld [vmem:[%s328 + $0x1a0] sm:$0xff]
        %v503 = vld [vmem:[%s328 + $0x1a8] sm:$0xff]
        %v504 = vld [vmem:[%s328 + $0x1b0] sm:$0xff]
        %v505 = vld [vmem:[%s328 + $0x1b8] sm:$0xff]
        %v506 = vld [vmem:[%s328 + $0x1c0] sm:$0xff]
        %v507 = vld [vmem:[%s328 + $0x1c8] sm:$0xff]
        %v508 = vld [vmem:[%s328 + $0x1d0] sm:$0xff]
        %v509 = vld [vmem:[%s328 + $0x1d8] sm:$0xff]
        %v510 = vld [vmem:[%s328 + $0x1e0] sm:$0xff]
        %v511 = vld [vmem:[%s328 + $0x1e8] sm:$0xff]
        %v512 = vld [vmem:[%s328 + $0x1f0] sm:$0xff]
        %v513 = vld [vmem:[%s328 + $0x1f8] sm:$0xff]
        %v514 = vld [vmem:[%s328 + $0x200] sm:$0xff]
        %v515 = vld [vmem:[%s328 + $0x208] sm:$0xff]
        %v516 = vld [vmem:[%s328 + $0x210] sm:$0xff]
        %v517 = vld [vmem:[%s328 + $0x218] sm:$0xff]
        %v518 = vld [vmem:[%s328 + $0x220] sm:$0xff]
        %v519 = vld [vmem:[%s328 + $0x228] sm:$0xff]
        %v520 = vld [vmem:[%s328 + $0x230] sm:$0xff]
        %v521 = vld [vmem:[%s328 + $0x238] sm:$0xff]
        %v522 = vld [vmem:[%s328 + $0x240] sm:$0xff]
        %v523 = vld [vmem:[%s328 + $0x248] sm:$0xff]
        %v524 = vld [vmem:[%s328 + $0x250] sm:$0xff]
        %v525 = vld [vmem:[%s328 + $0x258] sm:$0xff]
        %v526 = vld [vmem:[%s328 + $0x260] sm:$0xff]
        %v527 = vld [vmem:[%s328 + $0x268] sm:$0xff]
        %v528 = vld [vmem:[%s328 + $0x270] sm:$0xff]
        %v529 = vld [vmem:[%s328 + $0x278] sm:$0xff]
        %v530 = vld [vmem:[%s328 + $0x280] sm:$0xff]
        %v531 = vld [vmem:[%s328 + $0x288] sm:$0xff]
        %v532 = vld [vmem:[%s328 + $0x290] sm:$0xff]
        %v533 = vld [vmem:[%s328 + $0x298] sm:$0xff]
        %v534 = vld [vmem:[%s328 + $0x2a0] sm:$0xff]
        %v535 = vld [vmem:[%s328 + $0x2a8] sm:$0xff]
        %v536 = vld [vmem:[%s328 + $0x2b0] sm:$0xff]
        %v537 = vld [vmem:[%s328 + $0x2b8] sm:$0xff]
        %v538 = vld [vmem:[%s5] sm:$0xff]
        %v539 = vld [vmem:[%s5 + $0x8] sm:$0xff]
        %541 = vset.pattern.permute.xlu0 0
        %542 = vperm.xlu0 %541, %v538
        %v543 = vpop.permute.xlu0 %542
        %546 = vset.pattern.permute.xlu0 0
        %547 = vperm.xlu0 %546, %v539
        %v548 = vpop.permute.xlu0 %547
        %v552 = vunpack.c.l.b16 %v448
        %v553 = vunpack.c.l.b16 %v449
        %v554 = vpack.c.b16 %v553, %v552
        %v643 = vunpack.c.l.b16 %v450
        %v644 = vunpack.c.h.b16 %v450
        %v645 = vunpack.c.l.b16 %v451
        %v646 = vunpack.c.h.b16 %v451
        %v647 = vunpack.c.l.b16 %v452
        %v648 = vunpack.c.h.b16 %v452
        %v649 = vunpack.c.l.b16 %v453
        %v650 = vunpack.c.h.b16 %v453
        %v651 = vunpack.c.l.b16 %v454
        %v652 = vunpack.c.h.b16 %v454
        %v653 = vunpack.c.l.b16 %v455
        %v654 = vunpack.c.h.b16 %v455
        %v655 = vunpack.c.l.b16 %v456
        %v656 = vunpack.c.h.b16 %v456
        %v657 = vunpack.c.l.b16 %v457
        %v658 = vunpack.c.h.b16 %v457
        %v659 = vunpack.c.l.b16 %v458
        %v660 = vunpack.c.h.b16 %v458
        %v661 = vunpack.c.l.b16 %v459
        %v662 = vunpack.c.h.b16 %v459
        %v663 = vunpack.c.l.b16 %v460
        %v664 = vunpack.c.h.b16 %v460
        %v665 = vunpack.c.l.b16 %v461
        %v666 = vunpack.c.h.b16 %v461
        %v667 = vunpack.c.l.b16 %v462
        %v668 = vunpack.c.h.b16 %v462
        %v669 = vunpack.c.l.b16 %v463
        %v670 = vunpack.c.h.b16 %v463
        %v671 = vunpack.c.l.b16 %v464
        %v672 = vunpack.c.h.b16 %v464
        %v673 = vunpack.c.l.b16 %v465
        %v674 = vunpack.c.h.b16 %v465
        %v675 = vunpack.c.l.b16 %v466
        %v676 = vunpack.c.h.b16 %v466
        %v677 = vunpack.c.l.b16 %v467
        %v678 = vunpack.c.h.b16 %v467
        %v679 = vunpack.c.l.b16 %v468
        %v680 = vunpack.c.h.b16 %v468
        %v681 = vunpack.c.l.b16 %v469
        %v682 = vunpack.c.h.b16 %v469
        %v683 = vunpack.c.l.b16 %v470
        %v684 = vunpack.c.h.b16 %v470
        %v685 = vunpack.c.l.b16 %v471
        %v686 = vunpack.c.h.b16 %v471
        %v687 = vunpack.c.l.b16 %v472
        %v688 = vunpack.c.h.b16 %v472
        %v689 = vunpack.c.l.b16 %v473
        %v690 = vunpack.c.h.b16 %v473
        %v691 = vunpack.c.l.b16 %v474
        %v692 = vunpack.c.h.b16 %v474
        %v693 = vunpack.c.l.b16 %v475
        %v694 = vunpack.c.h.b16 %v475
        %v695 = vunpack.c.l.b16 %v476
        %v696 = vunpack.c.h.b16 %v476
        %v697 = vunpack.c.l.b16 %v477
        %v698 = vunpack.c.h.b16 %v477
        %v699 = vunpack.c.l.b16 %v478
        %v700 = vunpack.c.h.b16 %v478
        %v701 = vunpack.c.l.b16 %v479
        %v702 = vunpack.c.h.b16 %v479
        %v703 = vunpack.c.l.b16 %v480
        %v704 = vunpack.c.h.b16 %v480
        %v705 = vunpack.c.l.b16 %v481
        %v706 = vunpack.c.h.b16 %v481
        %v707 = vunpack.c.l.b16 %v482
        %v708 = vunpack.c.h.b16 %v482
        %v709 = vunpack.c.l.b16 %v483
        %v710 = vunpack.c.h.b16 %v483
        %v711 = vunpack.c.l.b16 %v484
        %v712 = vunpack.c.h.b16 %v484
        %v713 = vunpack.c.l.b16 %v485
        %v714 = vunpack.c.h.b16 %v485
        %v715 = vunpack.c.l.b16 %v486
        %v716 = vunpack.c.h.b16 %v486
        %v717 = vunpack.c.l.b16 %v487
        %v718 = vunpack.c.h.b16 %v487
        %v719 = vunpack.c.l.b16 %v488
        %v720 = vunpack.c.h.b16 %v488
        %v721 = vunpack.c.l.b16 %v489
        %v722 = vunpack.c.h.b16 %v489
        %v723 = vunpack.c.l.b16 %v490
        %v724 = vunpack.c.h.b16 %v490
        %v725 = vunpack.c.l.b16 %v491
        %v726 = vunpack.c.h.b16 %v491
        %v727 = vunpack.c.l.b16 %v492
        %v728 = vunpack.c.h.b16 %v492
        %v729 = vunpack.c.l.b16 %v493
        %v730 = vunpack.c.h.b16 %v493
        %v731 = vunpack.c.l.b16 %v494
        %v732 = vunpack.c.h.b16 %v494
        %v733 = vunpack.c.l.b16 %v495
        %v734 = vunpack.c.h.b16 %v495
        %v735 = vunpack.c.l.b16 %v496
        %v736 = vunpack.c.h.b16 %v496
        %v737 = vunpack.c.l.b16 %v497
        %v738 = vunpack.c.h.b16 %v497
        %v739 = vunpack.c.l.b16 %v498
        %v740 = vunpack.c.h.b16 %v498
        %v741 = vunpack.c.l.b16 %v499
        %v742 = vunpack.c.h.b16 %v499
        %v743 = vunpack.c.l.b16 %v500
        %v744 = vunpack.c.h.b16 %v500
        %v745 = vunpack.c.l.b16 %v501
        %v746 = vunpack.c.h.b16 %v501
        %v747 = vunpack.c.l.b16 %v502
        %v748 = vunpack.c.h.b16 %v502
        %v749 = vunpack.c.l.b16 %v503
        %v750 = vunpack.c.h.b16 %v503
        %v751 = vunpack.c.l.b16 %v504
        %v752 = vunpack.c.h.b16 %v504
        %v753 = vunpack.c.l.b16 %v505
        %v754 = vunpack.c.h.b16 %v505
        %v755 = vunpack.c.l.b16 %v506
        %v756 = vunpack.c.h.b16 %v506
        %v757 = vunpack.c.l.b16 %v507
        %v758 = vunpack.c.h.b16 %v507
        %v759 = vunpack.c.l.b16 %v508
        %v760 = vunpack.c.h.b16 %v508
        %v761 = vunpack.c.l.b16 %v509
        %v762 = vunpack.c.h.b16 %v509
        %v763 = vunpack.c.l.b16 %v510
        %v764 = vunpack.c.h.b16 %v510
        %v765 = vunpack.c.l.b16 %v511
        %v766 = vunpack.c.h.b16 %v511
        %v767 = vunpack.c.l.b16 %v512
        %v768 = vunpack.c.h.b16 %v512
        %v769 = vunpack.c.l.b16 %v513
        %v770 = vunpack.c.h.b16 %v513
        %v771 = vunpack.c.l.b16 %v514
        %v772 = vunpack.c.h.b16 %v514
        %v773 = vunpack.c.l.b16 %v515
        %v774 = vunpack.c.h.b16 %v515
        %v775 = vunpack.c.l.b16 %v516
        %v776 = vunpack.c.h.b16 %v516
        %v777 = vunpack.c.l.b16 %v517
        %v778 = vunpack.c.h.b16 %v517
        %v779 = vunpack.c.l.b16 %v518
        %v780 = vunpack.c.h.b16 %v518
        %v781 = vunpack.c.l.b16 %v519
        %v782 = vunpack.c.h.b16 %v519
        %v783 = vunpack.c.l.b16 %v520
        %v784 = vunpack.c.h.b16 %v520
        %v785 = vunpack.c.l.b16 %v521
        %v786 = vunpack.c.h.b16 %v521
        %v787 = vunpack.c.l.b16 %v522
        %v788 = vunpack.c.h.b16 %v522
        %v789 = vunpack.c.l.b16 %v523
        %v790 = vunpack.c.h.b16 %v523
        %v791 = vunpack.c.l.b16 %v524
        %v792 = vunpack.c.h.b16 %v524
        %v793 = vunpack.c.l.b16 %v525
        %v794 = vunpack.c.h.b16 %v525
        %v795 = vunpack.c.l.b16 %v526
        %v796 = vunpack.c.h.b16 %v526
        %v797 = vunpack.c.l.b16 %v527
        %v798 = vunpack.c.h.b16 %v527
        %v799 = vunpack.c.l.b16 %v528
        %v800 = vunpack.c.h.b16 %v528
        %v801 = vunpack.c.l.b16 %v529
        %v802 = vunpack.c.h.b16 %v529
        %v803 = vunpack.c.l.b16 %v530
        %v804 = vunpack.c.h.b16 %v530
        %v805 = vunpack.c.l.b16 %v531
        %v806 = vunpack.c.h.b16 %v531
        %v807 = vunpack.c.l.b16 %v532
        %v808 = vunpack.c.h.b16 %v532
        %v809 = vunpack.c.l.b16 %v533
        %v810 = vunpack.c.h.b16 %v533
        %v811 = vunpack.c.l.b16 %v534
        %v812 = vunpack.c.h.b16 %v534
        %v813 = vunpack.c.l.b16 %v535
        %v814 = vunpack.c.h.b16 %v535
        %v815 = vunpack.c.l.b16 %v536
        %v816 = vunpack.c.h.b16 %v536
        %v817 = vunpack.c.l.b16 %v537
        %v818 = vunpack.c.h.b16 %v537
        %v819 = vpack.c.b16 %v659, %v643
        %v820 = vpack.c.b16 %v660, %v644
        %v821 = vpack.c.b16 %v661, %v645
        %v822 = vpack.c.b16 %v662, %v646
        %v823 = vpack.c.b16 %v663, %v647
        %v824 = vpack.c.b16 %v664, %v648
        %v825 = vpack.c.b16 %v665, %v649
        %v826 = vpack.c.b16 %v666, %v650
        %v827 = vpack.c.b16 %v667, %v651
        %v828 = vpack.c.b16 %v668, %v652
        %v829 = vpack.c.b16 %v669, %v653
        %v830 = vpack.c.b16 %v670, %v654
        %v831 = vpack.c.b16 %v671, %v655
        %v832 = vpack.c.b16 %v672, %v656
        %v833 = vpack.c.b16 %v673, %v657
        %v834 = vpack.c.b16 %v674, %v658
        %v835 = vpack.c.b16 %v691, %v675
        %v836 = vpack.c.b16 %v692, %v676
        %v837 = vpack.c.b16 %v693, %v677
        %v838 = vpack.c.b16 %v694, %v678
        %v839 = vpack.c.b16 %v695, %v679
        %v840 = vpack.c.b16 %v696, %v680
        %v841 = vpack.c.b16 %v697, %v681
        %v842 = vpack.c.b16 %v698, %v682
        %v843 = vpack.c.b16 %v699, %v683
        %v844 = vpack.c.b16 %v700, %v684
        %v845 = vpack.c.b16 %v701, %v685
        %v846 = vpack.c.b16 %v702, %v686
        %v847 = vpack.c.b16 %v703, %v687
        %v848 = vpack.c.b16 %v704, %v688
        %v849 = vpack.c.b16 %v705, %v689
        %v850 = vpack.c.b16 %v706, %v690
        %v851 = vpack.c.b16 %v723, %v707
        %v852 = vpack.c.b16 %v724, %v708
        %v853 = vpack.c.b16 %v725, %v709
        %v854 = vpack.c.b16 %v726, %v710
        %v855 = vpack.c.b16 %v727, %v711
        %v856 = vpack.c.b16 %v728, %v712
        %v857 = vpack.c.b16 %v729, %v713
        %v858 = vpack.c.b16 %v730, %v714
        %v859 = vpack.c.b16 %v731, %v715
        %v860 = vpack.c.b16 %v732, %v716
        %v861 = vpack.c.b16 %v733, %v717
        %v862 = vpack.c.b16 %v734, %v718
        %v863 = vpack.c.b16 %v735, %v719
        %v864 = vpack.c.b16 %v736, %v720
        %v865 = vpack.c.b16 %v737, %v721
        %v866 = vpack.c.b16 %v738, %v722
        %v867 = vpack.c.b16 %v755, %v739
        %v868 = vpack.c.b16 %v756, %v740
        %v869 = vpack.c.b16 %v757, %v741
        %v870 = vpack.c.b16 %v758, %v742
        %v871 = vpack.c.b16 %v759, %v743
        %v872 = vpack.c.b16 %v760, %v744
        %v873 = vpack.c.b16 %v761, %v745
        %v874 = vpack.c.b16 %v762, %v746
        %v875 = vpack.c.b16 %v763, %v747
        %v876 = vpack.c.b16 %v764, %v748
        %v877 = vpack.c.b16 %v765, %v749
        %v878 = vpack.c.b16 %v766, %v750
        %v879 = vpack.c.b16 %v767, %v751
        %v880 = vpack.c.b16 %v768, %v752
        %v881 = vpack.c.b16 %v769, %v753
        %v882 = vpack.c.b16 %v770, %v754
        %v883 = vpack.c.b16 %v787, %v771
        %v884 = vpack.c.b16 %v788, %v772
        %v885 = vpack.c.b16 %v789, %v773
        %v886 = vpack.c.b16 %v790, %v774
        %v887 = vpack.c.b16 %v791, %v775
        %v888 = vpack.c.b16 %v792, %v776
        %v889 = vpack.c.b16 %v793, %v777
        %v890 = vpack.c.b16 %v794, %v778
        %v891 = vpack.c.b16 %v795, %v779
        %v892 = vpack.c.b16 %v796, %v780
        %v893 = vpack.c.b16 %v797, %v781
        %v894 = vpack.c.b16 %v798, %v782
        %v895 = vpack.c.b16 %v799, %v783
        %v896 = vpack.c.b16 %v800, %v784
        %v897 = vpack.c.b16 %v801, %v785
        %v898 = vpack.c.b16 %v802, %v786
        %v899 = vpack.c.b16 %v803, %v803
        %v900 = vpack.c.b16 %v804, %v804
        %v901 = vpack.c.b16 %v805, %v805
        %v902 = vpack.c.b16 %v806, %v806
        %v903 = vpack.c.b16 %v807, %v807
        %v904 = vpack.c.b16 %v808, %v808
        %v905 = vpack.c.b16 %v809, %v809
        %v906 = vpack.c.b16 %v810, %v810
        %v907 = vpack.c.b16 %v811, %v811
        %v908 = vpack.c.b16 %v812, %v812
        %v909 = vpack.c.b16 %v813, %v813
        %v910 = vpack.c.b16 %v814, %v814
        %v911 = vpack.c.b16 %v815, %v815
        %v912 = vpack.c.b16 %v816, %v816
        %v913 = vpack.c.b16 %v817, %v817
        %v914 = vpack.c.b16 %v818, %v818
        %vm995 = vcmask 719872
        %v997 = vsel %vm995, %v554, 0
        %vm999 = vcmask 1043456
        %v1001 = vsel %vm999, %v899, 0
        %v1004 = vsel %vm999, %v900, 0
        %v1007 = vsel %vm999, %v901, 0
        %v1010 = vsel %vm999, %v902, 0
        %v1013 = vsel %vm999, %v903, 0
        %v1016 = vsel %vm999, %v904, 0
        %v1019 = vsel %vm999, %v905, 0
        %v1022 = vsel %vm999, %v906, 0
        %v1025 = vsel %vm999, %v907, 0
        %v1028 = vsel %vm999, %v908, 0
        %v1031 = vsel %vm999, %v909, 0
        %v1034 = vsel %vm999, %v910, 0
        %v1037 = vsel %vm999, %v911, 0
        %v1040 = vsel %vm999, %v912, 0
        %v1043 = vsel %vm999, %v913, 0
        %v1046 = vsel %vm999, %v914, 0
        %1048 = vmatpush.bf16.msra.mxu0 0
        %1049 = vmatpush.bf16.msra.mxu0 0
        %1050 = vmatpush.bf16.msra.mxu0 %v1001
        %1051 = vmatpush.bf16.msra.mxu0 %v883
        %1052 = vmatpush.bf16.msra.mxu0 %v867
        %1053 = vmatpush.bf16.msra.mxu0 %v851
        %1054 = vmatpush.bf16.msra.mxu0 %v835
        %1055 = vmatpush.bf16.msra.mxu0 %v819
        %1056 = vmatmul.bf16.gmra.mxu0 %v997
        %v1057 = vpop.f32.mrf.mxu0
        %v1058 = vadd.f32 %v543, %v1057
        %v1059 = vpop.f32.mrf.mxu0
        %v1060 = vadd.f32 %v548, %v1059
        %1061 = vdwg.mxu0
        %1062 = vmatpush.bf16.msra.mxu0 0
        %1063 = vmatpush.bf16.msra.mxu0 0
        %1064 = vmatpush.bf16.msra.mxu0 %v1004
        %1065 = vmatpush.bf16.msra.mxu0 %v884
        %1066 = vmatpush.bf16.msra.mxu0 %v868
        %1067 = vmatpush.bf16.msra.mxu0 %v852
        %1068 = vmatpush.bf16.msra.mxu0 %v836
        %1069 = vmatpush.bf16.msra.mxu0 %v820
        %1070 = vmatmul.bf16.gmra.mxu0 %v997
        %v1071 = vpop.f32.mrf.mxu0
        %v1072 = vadd.f32 %v543, %v1071
        %v1073 = vpop.f32.mrf.mxu0
        %v1074 = vadd.f32 %v548, %v1073
        %1075 = vdwg.mxu0
        %1076 = vmatpush.bf16.msra.mxu0 0
        %1077 = vmatpush.bf16.msra.mxu0 0
        %1078 = vmatpush.bf16.msra.mxu0 %v1007
        %1079 = vmatpush.bf16.msra.mxu0 %v885
        %1080 = vmatpush.bf16.msra.mxu0 %v869
        %1081 = vmatpush.bf16.msra.mxu0 %v853
        %1082 = vmatpush.bf16.msra.mxu0 %v837
        %1083 = vmatpush.bf16.msra.mxu0 %v821
        %1084 = vmatmul.bf16.gmra.mxu0 %v997
        %v1085 = vpop.f32.mrf.mxu0
        %v1086 = vadd.f32 %v543, %v1085
        %v1087 = vpop.f32.mrf.mxu0
        %v1088 = vadd.f32 %v548, %v1087
        %1089 = vdwg.mxu0
        %1090 = vmatpush.bf16.msra.mxu0 0
        %1091 = vmatpush.bf16.msra.mxu0 0
        %1092 = vmatpush.bf16.msra.mxu0 %v1010
        %1093 = vmatpush.bf16.msra.mxu0 %v886
        %1094 = vmatpush.bf16.msra.mxu0 %v870
        %1095 = vmatpush.bf16.msra.mxu0 %v854
        %1096 = vmatpush.bf16.msra.mxu0 %v838
        %1097 = vmatpush.bf16.msra.mxu0 %v822
        %1098 = vmatmul.bf16.gmra.mxu0 %v997
        %v1099 = vpop.f32.mrf.mxu0
        %v1100 = vadd.f32 %v543, %v1099
        %v1101 = vpop.f32.mrf.mxu0
        %v1102 = vadd.f32 %v548, %v1101
        %1103 = vdwg.mxu0
        %1104 = vmatpush.bf16.msra.mxu0 0
        %1105 = vmatpush.bf16.msra.mxu0 0
        %1106 = vmatpush.bf16.msra.mxu0 %v1013
        %1107 = vmatpush.bf16.msra.mxu0 %v887
        %1108 = vmatpush.bf16.msra.mxu0 %v871
        %1109 = vmatpush.bf16.msra.mxu0 %v855
        %1110 = vmatpush.bf16.msra.mxu0 %v839
        %1111 = vmatpush.bf16.msra.mxu0 %v823
        %1112 = vmatmul.bf16.gmra.mxu0 %v997
        %v1113 = vpop.f32.mrf.mxu0
        %v1114 = vadd.f32 %v543, %v1113
        %v1115 = vpop.f32.mrf.mxu0
        %v1116 = vadd.f32 %v548, %v1115
        %1117 = vdwg.mxu0
        %1118 = vmatpush.bf16.msra.mxu0 0
        %1119 = vmatpush.bf16.msra.mxu0 0
        %1120 = vmatpush.bf16.msra.mxu0 %v1016
        %1121 = vmatpush.bf16.msra.mxu0 %v888
        %1122 = vmatpush.bf16.msra.mxu0 %v872
        %1123 = vmatpush.bf16.msra.mxu0 %v856
        %1124 = vmatpush.bf16.msra.mxu0 %v840
        %1125 = vmatpush.bf16.msra.mxu0 %v824
        %1126 = vmatmul.bf16.gmra.mxu0 %v997
        %v1127 = vpop.f32.mrf.mxu0
        %v1128 = vadd.f32 %v543, %v1127
        %v1129 = vpop.f32.mrf.mxu0
        %v1130 = vadd.f32 %v548, %v1129
        %1131 = vdwg.mxu0
        %1132 = vmatpush.bf16.msra.mxu0 0
        %1133 = vmatpush.bf16.msra.mxu0 0
        %1134 = vmatpush.bf16.msra.mxu0 %v1019
        %1135 = vmatpush.bf16.msra.mxu0 %v889
        %1136 = vmatpush.bf16.msra.mxu0 %v873
        %1137 = vmatpush.bf16.msra.mxu0 %v857
        %1138 = vmatpush.bf16.msra.mxu0 %v841
        %1139 = vmatpush.bf16.msra.mxu0 %v825
        %1140 = vmatmul.bf16.gmra.mxu0 %v997
        %v1141 = vpop.f32.mrf.mxu0
        %v1142 = vadd.f32 %v543, %v1141
        %v1143 = vpop.f32.mrf.mxu0
        %v1144 = vadd.f32 %v548, %v1143
        %1145 = vdwg.mxu0
        %1146 = vmatpush.bf16.msra.mxu0 0
        %1147 = vmatpush.bf16.msra.mxu0 0
        %1148 = vmatpush.bf16.msra.mxu0 %v1022
        %1149 = vmatpush.bf16.msra.mxu0 %v890
        %1150 = vmatpush.bf16.msra.mxu0 %v874
        %1151 = vmatpush.bf16.msra.mxu0 %v858
        %1152 = vmatpush.bf16.msra.mxu0 %v842
        %1153 = vmatpush.bf16.msra.mxu0 %v826
        %1154 = vmatmul.bf16.gmra.mxu0 %v997
        %v1155 = vpop.f32.mrf.mxu0
        %v1156 = vadd.f32 %v543, %v1155
        %v1157 = vpop.f32.mrf.mxu0
        %v1158 = vadd.f32 %v548, %v1157
        %1159 = vdwg.mxu0
        %1160 = vmatpush.bf16.msra.mxu0 0
        %1161 = vmatpush.bf16.msra.mxu0 0
        %1162 = vmatpush.bf16.msra.mxu0 %v1025
        %1163 = vmatpush.bf16.msra.mxu0 %v891
        %1164 = vmatpush.bf16.msra.mxu0 %v875
        %1165 = vmatpush.bf16.msra.mxu0 %v859
        %1166 = vmatpush.bf16.msra.mxu0 %v843
        %1167 = vmatpush.bf16.msra.mxu0 %v827
        %1168 = vmatmul.bf16.gmra.mxu0 %v997
        %v1169 = vpop.f32.mrf.mxu0
        %v1170 = vadd.f32 %v543, %v1169
        %v1171 = vpop.f32.mrf.mxu0
        %v1172 = vadd.f32 %v548, %v1171
        %1173 = vdwg.mxu0
        %1174 = vmatpush.bf16.msra.mxu0 0
        %1175 = vmatpush.bf16.msra.mxu0 0
        %1176 = vmatpush.bf16.msra.mxu0 %v1028
        %1177 = vmatpush.bf16.msra.mxu0 %v892
        %1178 = vmatpush.bf16.msra.mxu0 %v876
        %1179 = vmatpush.bf16.msra.mxu0 %v860
        %1180 = vmatpush.bf16.msra.mxu0 %v844
        %1181 = vmatpush.bf16.msra.mxu0 %v828
        %1182 = vmatmul.bf16.gmra.mxu0 %v997
        %v1183 = vpop.f32.mrf.mxu0
        %v1184 = vadd.f32 %v543, %v1183
        %v1185 = vpop.f32.mrf.mxu0
        %v1186 = vadd.f32 %v548, %v1185
        %1187 = vdwg.mxu0
        %1188 = vmatpush.bf16.msra.mxu0 0
        %1189 = vmatpush.bf16.msra.mxu0 0
        %1190 = vmatpush.bf16.msra.mxu0 %v1031
        %1191 = vmatpush.bf16.msra.mxu0 %v893
        %1192 = vmatpush.bf16.msra.mxu0 %v877
        %1193 = vmatpush.bf16.msra.mxu0 %v861
        %1194 = vmatpush.bf16.msra.mxu0 %v845
        %1195 = vmatpush.bf16.msra.mxu0 %v829
        %1196 = vmatmul.bf16.gmra.mxu0 %v997
        %v1197 = vpop.f32.mrf.mxu0
        %v1198 = vadd.f32 %v543, %v1197
        %v1199 = vpop.f32.mrf.mxu0
        %v1200 = vadd.f32 %v548, %v1199
        %1201 = vdwg.mxu0
        %1202 = vmatpush.bf16.msra.mxu0 0
        %1203 = vmatpush.bf16.msra.mxu0 0
        %1204 = vmatpush.bf16.msra.mxu0 %v1034
        %1205 = vmatpush.bf16.msra.mxu0 %v894
        %1206 = vmatpush.bf16.msra.mxu0 %v878
        %1207 = vmatpush.bf16.msra.mxu0 %v862
        %1208 = vmatpush.bf16.msra.mxu0 %v846
        %1209 = vmatpush.bf16.msra.mxu0 %v830
        %1210 = vmatmul.bf16.gmra.mxu0 %v997
        %v1211 = vpop.f32.mrf.mxu0
        %v1212 = vadd.f32 %v543, %v1211
        %v1213 = vpop.f32.mrf.mxu0
        %v1214 = vadd.f32 %v548, %v1213
        %1215 = vdwg.mxu0
        %1216 = vmatpush.bf16.msra.mxu0 0
        %1217 = vmatpush.bf16.msra.mxu0 0
        %1218 = vmatpush.bf16.msra.mxu0 %v1037
        %1219 = vmatpush.bf16.msra.mxu0 %v895
        %1220 = vmatpush.bf16.msra.mxu0 %v879
        %1221 = vmatpush.bf16.msra.mxu0 %v863
        %1222 = vmatpush.bf16.msra.mxu0 %v847
        %1223 = vmatpush.bf16.msra.mxu0 %v831
        %1224 = vmatmul.bf16.gmra.mxu0 %v997
        %v1225 = vpop.f32.mrf.mxu0
        %v1226 = vadd.f32 %v543, %v1225
        %v1227 = vpop.f32.mrf.mxu0
        %v1228 = vadd.f32 %v548, %v1227
        %1229 = vdwg.mxu0
        %1230 = vmatpush.bf16.msra.mxu0 0
        %1231 = vmatpush.bf16.msra.mxu0 0
        %1232 = vmatpush.bf16.msra.mxu0 %v1040
        %1233 = vmatpush.bf16.msra.mxu0 %v896
        %1234 = vmatpush.bf16.msra.mxu0 %v880
        %1235 = vmatpush.bf16.msra.mxu0 %v864
        %1236 = vmatpush.bf16.msra.mxu0 %v848
        %1237 = vmatpush.bf16.msra.mxu0 %v832
        %1238 = vmatmul.bf16.gmra.mxu0 %v997
        %v1239 = vpop.f32.mrf.mxu0
        %v1240 = vadd.f32 %v543, %v1239
        %v1241 = vpop.f32.mrf.mxu0
        %v1242 = vadd.f32 %v548, %v1241
        %1243 = vdwg.mxu0
        %1244 = vmatpush.bf16.msra.mxu0 0
        %1245 = vmatpush.bf16.msra.mxu0 0
        %1246 = vmatpush.bf16.msra.mxu0 %v1043
        %1247 = vmatpush.bf16.msra.mxu0 %v897
        %1248 = vmatpush.bf16.msra.mxu0 %v881
        %1249 = vmatpush.bf16.msra.mxu0 %v865
        %1250 = vmatpush.bf16.msra.mxu0 %v849
        %1251 = vmatpush.bf16.msra.mxu0 %v833
        %1252 = vmatmul.bf16.gmra.mxu0 %v997
        %v1253 = vpop.f32.mrf.mxu0
        %v1254 = vadd.f32 %v543, %v1253
        %v1255 = vpop.f32.mrf.mxu0
        %v1256 = vadd.f32 %v548, %v1255
        %1257 = vdwg.mxu0
        %1258 = vmatpush.bf16.msra.mxu0 0
        %1259 = vmatpush.bf16.msra.mxu0 0
        %1260 = vmatpush.bf16.msra.mxu0 %v1046
        %1261 = vmatpush.bf16.msra.mxu0 %v898
        %1262 = vmatpush.bf16.msra.mxu0 %v882
        %1263 = vmatpush.bf16.msra.mxu0 %v866
        %1264 = vmatpush.bf16.msra.mxu0 %v850
        %1265 = vmatpush.bf16.msra.mxu0 %v834
        %1266 = vmatmul.bf16.gmra.mxu0 %v997
        %v1267 = vpop.f32.mrf.mxu0
        %v1268 = vadd.f32 %v543, %v1267
        %v1269 = vpop.f32.mrf.mxu0
        %v1270 = vadd.f32 %v548, %v1269
        %1271 = vdwg.mxu0
        %v1272 = vmul.f32 %v432, %v1058
        %v1273 = vmul.f32 %v433, %v1072
        %v1274 = vmul.f32 %v434, %v1086
        %v1275 = vmul.f32 %v435, %v1100
        %v1276 = vmul.f32 %v436, %v1114
        %v1277 = vmul.f32 %v437, %v1128
        %v1278 = vmul.f32 %v438, %v1142
        %v1279 = vmul.f32 %v439, %v1156
        %v1280 = vmul.f32 %v440, %v1170
        %v1281 = vmul.f32 %v441, %v1184
        %v1282 = vmul.f32 %v442, %v1198
        %v1283 = vmul.f32 %v443, %v1212
        %v1284 = vmul.f32 %v444, %v1226
        %v1285 = vmul.f32 %v445, %v1240
        %v1286 = vmul.f32 %v446, %v1254
        %v1287 = vmul.f32 %v447, %v1268
        %v1288 = vadd.f32 %v1272, %v1060
        %v1289 = vadd.f32 %v1273, %v1074
        %v1290 = vadd.f32 %v1274, %v1088
        %v1291 = vadd.f32 %v1275, %v1102
        %v1292 = vadd.f32 %v1276, %v1116
        %v1293 = vadd.f32 %v1277, %v1130
        %v1294 = vadd.f32 %v1278, %v1144
        %v1295 = vadd.f32 %v1279, %v1158
        %v1296 = vadd.f32 %v1280, %v1172
        %v1297 = vadd.f32 %v1281, %v1186
        %v1298 = vadd.f32 %v1282, %v1200
        %v1299 = vadd.f32 %v1283, %v1214
        %v1300 = vadd.f32 %v1284, %v1228
        %v1301 = vadd.f32 %v1285, %v1242
        %v1302 = vadd.f32 %v1286, %v1256
        %v1303 = vadd.f32 %v1287, %v1270
        %1304 = vst [vmem:[%s375] sm:$0xff] %v1288
        %1305 = vst [vmem:[%s375 + $0x8] sm:$0xff] %v1289
        %1306 = vst [vmem:[%s375 + $0x10] sm:$0xff] %v1290
        %1307 = vst [vmem:[%s375 + $0x18] sm:$0xff] %v1291
        %1308 = vst [vmem:[%s375 + $0x20] sm:$0xff] %v1292
        %1309 = vst [vmem:[%s375 + $0x28] sm:$0xff] %v1293
        %1310 = vst [vmem:[%s375 + $0x30] sm:$0xff] %v1294
        %1311 = vst [vmem:[%s375 + $0x38] sm:$0xff] %v1295
        %1312 = vst [vmem:[%s375 + $0x40] sm:$0xff] %v1296
        %1313 = vst [vmem:[%s375 + $0x48] sm:$0xff] %v1297
        %1314 = vst [vmem:[%s375 + $0x50] sm:$0xff] %v1298
        %1315 = vst [vmem:[%s375 + $0x58] sm:$0xff] %v1299
        %1316 = vst [vmem:[%s375 + $0x60] sm:$0xff] %v1300
        %1317 = vst [vmem:[%s375 + $0x68] sm:$0xff] %v1301
        %1318 = vst [vmem:[%s375 + $0x70] sm:$0xff] %v1302
        %1319 = vst [vmem:[%s375 + $0x78] sm:$0xff] %v1303
        %s1320 = sand.u32 %s198, 1
        %s1321 = scalar_lea.sflag [#allocation4], %s1320
        %s1322 = sand.u32 %s198, 1
        %s1323 = smul.addr %s1322, 128
        %s1324 = scalar_lea.vmem [#allocation8], %s1323
        // Predicated region
        $region57: #{tpu_custom_call.1} parent=43 // pred_check
          %p1325 = pneg %p208
        $region58: #{tpu_custom_call.1} parent=43 // pred_check_branch
          %1327 = sbr.rel (%p1325) target = $region60
        $region59: #{tpu_custom_call.1} parent=43 // pred_region
          %s1328 = smul.u32 16, %s31
          %1330 = vsyncadd %s1321, 0
          %s1331 = smul.addr %s30, 32
          %s1332 = sadd.s32 %s1328, %s1331
          %s1333 = smul.addr %s1332, 8
          %s1334 = scalar_lea.hbm %s6, %s1333
          %s1336 = sshll.u32 %s1324, 4
          %s1337 = int_to_ptr.vmem [resolvable:$true] %s1336
          %s1338 = sshll.u32 %s1334, 4
          %s1339 = int_to_ptr.hbm [resolvable:$true] %s1338
          %1341 = dma.vmem_to_hbm [thread:$0]  %s1337, 2048, %s1339, %s1321
        $region60: #{tpu_custom_call.1} parent=43 // pred_fallthru
          _
      $region44: #{tpu_custom_call.1} parent=5 // pred_fallthru
        _
      %p1342 = scmp.le.s32.totalorder 2, %s21
      // Predicated region
      $region61: #{tpu_custom_call.1} parent=5 // pred_check
        %p1343 = pneg %p1342
      $region62: #{tpu_custom_call.1} parent=5 // pred_check_branch
        %1345 = sbr.rel (%p1343) target = $region64
      $region63: #{tpu_custom_call.1} parent=5 // pred_region
        %s1346 = ssub.s32 %s21, 2
        // Predicated region
        $region65: #{tpu_custom_call.1} parent=63 // pred_check
          %p1347 = pneg %p214
        $region66: #{tpu_custom_call.1} parent=63 // pred_check_branch
          %1349 = sbr.rel (%p1347) target = $region68
        $region67: #{tpu_custom_call.1} parent=63 // pred_region
          %s1350 = sand.u32 %s199, 1
          %s1351 = scalar_lea.sflag [#allocation4], %s1350
          %s1352 = sand.u32 %s199, 1
          %s1353 = smul.addr %s1352, 128
          %s1354 = scalar_lea.vmem [#allocation8], %s1353
          %1356 = dma.done %s1351, 2048
        $region68: #{tpu_custom_call.1} parent=63 // pred_fallthru
          _
      $region64: #{tpu_custom_call.1} parent=5 // pred_fallthru
        _
    $region6: #{tpu_custom_call.1} parent=1 // loop_footer
      %s25 = sadd.s32 1, %s21
    $region7: #{tpu_custom_call.1} parent=1 // loop_footer_branch
      %20 = sbr.rel target = $region3
    $region8: #{tpu_custom_call.1} parent=1 // loop_exit
      _
    %1357 = vsyncpa [#allocation3], 1
    %s1358 = scalar_lea.sflag [#allocation3], 1
    %1359 = vsyncpa %s1358, 1
    %1360 = vsyncpa [#allocation6], 1
    %s1361 = scalar_lea.sflag [#allocation6], 1
    %1362 = vsyncpa %s1361, 1
    %1363 = vsyncpa [#allocation4], 1
    %s1364 = scalar_lea.sflag [#allocation4], 1
    %1365 = vsyncpa %s1364, 1

</llo_original>
